<compile_context>
chip_gen: v7x
topology: tpu7x:2x2x1
jax: 0.10.0
libtpu: 0.0.40
codegen_flags: <defaults>
</compile_context>

<pallas_src>
import functools

import jax
import jax.numpy as jnp
from jax.experimental import pallas as pl
from jax.experimental.pallas import tpu as pltpu

LANE = 128
SUBLANE = 8
MAX_TILE_B = 1024                      # sweep 512-2048; multiple of 8
WEIGHT_VMEM_BUDGET = 16 * 1024 * 1024  # conservative resident-weight budget


def _round_up(x, m):
    return (x + m - 1) // m * m


def mlp_kernel(x_ref, w1_ref, b1_ref, w2_ref, b2_ref, w3_ref, b3_ref, o_ref):
    # x_ref: [tb, n_input] f32 (cast to bf16 in-kernel, free under DMA shadow).
    # w*_ref: bf16, fan_out padded to a multiple of 128 (lane-dense).
    # b*_ref: [1, fan_out_p] f32.
    # Matmuls: bf16 operands, f32 accumulation on the MXU; bias adds on VPU.
    x = x_ref[...].astype(jnp.bfloat16)
    h1 = jnp.dot(x, w1_ref[...], preferred_element_type=jnp.float32) + b1_ref[...]
    h2 = (jnp.dot(h1.astype(jnp.bfloat16), w2_ref[...],
                  preferred_element_type=jnp.float32) + b2_ref[...])
    h3 = (jnp.dot(h2.astype(jnp.bfloat16), w3_ref[...],
                  preferred_element_type=jnp.float32) + b3_ref[...])
    o_ref[...] = h3.astype(o_ref.dtype)  # lane-dense store (last dim mult of 128)


def init_mlp_params(key, n_input, n_hidden_1, n_hidden_2, n_output):
    """nn.Linear-like init (U[-1/sqrt(fan_in), +1/sqrt(fan_in)]).

    Weights are stored pre-transposed as [fan_in, fan_out] in bf16.  fan_out is
    zero-padded to a multiple of 128 (lane-dense); fan_in of layer 1 is left at
    its true size (matches the unpadded x), fan_in of layers 2/3 matches the
    previous layer's padded fan_out (extra rows are zero).  Biases are f32,
    zero-padded to [1, fan_out_p].  Zero padding keeps all padded hidden units
    exactly 0, so the logical result is unaffected.
    """
    ks = jax.random.split(key, 6)

    def linear(kw, kb, fan_in, fan_in_padded, fan_out):
        bound = 1.0 / float(fan_in) ** 0.5
        w = jax.random.uniform(kw, (fan_in, fan_out), jnp.float32, -bound, bound)
        b = jax.random.uniform(kb, (1, fan_out), jnp.float32, -bound, bound)
        fo_p = _round_up(fan_out, LANE)
        w_p = jnp.pad(w, ((0, fan_in_padded - fan_in),
                          (0, fo_p - fan_out))).astype(jnp.bfloat16)
        b_p = jnp.pad(b, ((0, 0), (0, fo_p - fan_out)))  # f32
        return w_p, b_p

    h1_p = _round_up(n_hidden_1, LANE)
    h2_p = _round_up(n_hidden_2, LANE)
    w1, b1 = linear(ks[0], ks[1], n_input, n_input, n_hidden_1)
    w2, b2 = linear(ks[2], ks[3], n_hidden_1, h1_p, n_hidden_2)
    w3, b3 = linear(ks[4], ks[5], n_hidden_2, h2_p, n_output)
    return {"w1": w1, "b1": b1, "w2": w2, "b2": b2, "w3": w3, "b3": b3}


@functools.partial(jax.jit,
                   static_argnames=("n_output", "tile_b", "out_dtype"))
def mlp_forward(x, w1, b1, w2, b2, w3, b3, *, n_output,
                tile_b=MAX_TILE_B, out_dtype=jnp.float32):
    """x: [B, n_input] float32 -> [B, n_output] out_dtype."""
    B, n_input = x.shape
    n_out_p = w3.shape[1]

    # Resident-weight sanity check (see TODO about a K-tiled fallback).
    w_bytes = sum(a.size * a.dtype.itemsize for a in (w1, b1, w2, b2, w3, b3))
    assert w_bytes <= WEIGHT_VMEM_BUDGET, (
        "resident weights exceed VMEM budget; add a K-tiled fallback")

    # Batch tile: multiple of 8, capped so v7x gets >=2 grid steps when B > 8.
    if B <= SUBLANE:
        tb = B  # single block == full batch dim (always layout-legal)
    else:
        tb = max(SUBLANE, min(tile_b, _round_up(pl.cdiv(B, 2), SUBLANE)))
    grid = (pl.cdiv(B, tb),)

    # Weights/biases: whole array per step, constant index_map -> VMEM-resident.
    def pin(a):
        return pl.BlockSpec(a.shape, lambda i: (0,) * a.ndim)

    out_p = pl.pallas_call(
        mlp_kernel,
        out_shape=jax.ShapeDtypeStruct((B, n_out_p), out_dtype),
        grid=grid,
        in_specs=[
            # x: batch-tiled, last dim = full array dim (no K padding needed).
            pl.BlockSpec((tb, n_input), lambda i: (i, 0)),
            pin(w1), pin(b1), pin(w2), pin(b2), pin(w3), pin(b3),
        ],
        out_specs=pl.BlockSpec((tb, n_out_p), lambda i: (i, 0)),
        compiler_params=pltpu.CompilerParams(
            dimension_semantics=("parallel",)),  # dual-TC sharding on v7x
    )(x, w1, b1, w2, b2, w3, b3)

    # Demo-only slice back to the logical width; skip when fusing downstream.
    return out_p[:, :n_output]


def mlp_reference(x, params, n_output):
    """Plain-JAX reference mirroring the kernel math (bf16 in, f32 accumulate)."""
    h = x.astype(jnp.bfloat16)
    out = None
    for wn, bn in (("w1", "b1"), ("w2", "b2"), ("w3", "b3")):
        out = (jnp.dot(h, params[wn], preferred_element_type=jnp.float32)
               + params[bn])
        h = out.astype(jnp.bfloat16)
    return out[:, :n_output]


if __name__ == "__main__":
    key = jax.random.PRNGKey(0)
    k_x, k_p = jax.random.split(key)

    # MLP(n_input=32, n_hidden_1=64, n_hidden_2=64, n_output=16), batch=8
    B, n_input, n_h1, n_h2, n_out = 8, 32, 64, 64, 16
    x = jax.random.normal(k_x, (B, n_input), jnp.float32)
    params = init_mlp_params(k_p, n_input, n_h1, n_h2, n_out)

    out = mlp_forward(x, params["w1"], params["b1"], params["w2"], params["b2"],
                      params["w3"], params["b3"], n_output=n_out)
    jax.block_until_ready(out)

    ref = mlp_reference(x, params, n_out)
    assert out.shape == (B, n_out), out.shape
    max_err = float(jnp.max(jnp.abs(out - ref)))
    assert jnp.allclose(out, ref, atol=1e-3, rtol=1e-3), max_err

    print("KERNEL_OK")
</pallas_src>

<mosaic_0001>
module attributes {stable_mosaic.version = 11 : i64} {
  func.func @mlp_kernel(%arg0: i32, %arg1: memref<8x32xf32, #tpu.memory_space<vmem>>, %arg2: memref<32x128xbf16, #tpu.memory_space<vmem>>, %arg3: memref<1x128xf32, #tpu.memory_space<vmem>>, %arg4: memref<128x128xbf16, #tpu.memory_space<vmem>>, %arg5: memref<1x128xf32, #tpu.memory_space<vmem>>, %arg6: memref<128x128xbf16, #tpu.memory_space<vmem>>, %arg7: memref<1x128xf32, #tpu.memory_space<vmem>>, %arg8: memref<8x128xf32, #tpu.memory_space<vmem>>) attributes {dimension_semantics = [#tpu.dimension_semantics<parallel>], iteration_bounds = array<i64: 1>, scalar_prefetch = 0 : i64, scratch_operands = 0 : i64, tpu.core_type = #tpu.core_type<tc>, window_params = [{transform_indices = @transform_0, window_bounds = array<i64: 8, 32>}, {pipeline_mode = #tpu.pipeline_mode<synchronous>, transform_indices = @transform_1, window_bounds = array<i64: 32, 128>}, {pipeline_mode = #tpu.pipeline_mode<synchronous>, transform_indices = @transform_2, window_bounds = array<i64: 1, 128>}, {pipeline_mode = #tpu.pipeline_mode<synchronous>, transform_indices = @transform_3, window_bounds = array<i64: 128, 128>}, {pipeline_mode = #tpu.pipeline_mode<synchronous>, transform_indices = @transform_4, window_bounds = array<i64: 1, 128>}, {pipeline_mode = #tpu.pipeline_mode<synchronous>, transform_indices = @transform_5, window_bounds = array<i64: 128, 128>}, {pipeline_mode = #tpu.pipeline_mode<synchronous>, transform_indices = @transform_6, window_bounds = array<i64: 1, 128>}, {transform_indices = @transform_7, window_bounds = array<i64: 8, 128>}]} {
    %c0 = arith.constant 0 : index
    %c0_0 = arith.constant 0 : index
    %0 = vector.load %arg1[%c0, %c0_0] : memref<8x32xf32, #tpu.memory_space<vmem>>, vector<8x32xf32>
    %1 = arith.truncf %0 : vector<8x32xf32> to vector<8x32xbf16>
    %c0_1 = arith.constant 0 : index
    %c0_2 = arith.constant 0 : index
    %2 = vector.load %arg2[%c0_1, %c0_2] : memref<32x128xbf16, #tpu.memory_space<vmem>>, vector<32x128xbf16>
    %cst = arith.constant dense<0.000000e+00> : vector<8x128xf32>
    %3 = tpu.matmul %1, %2, %cst {dimension_numbers = #tpu.dot_dimension_numbers<[1], [0], [0], [1], [0, 0, 1, 1], [], []>} : vector<8x32xbf16>, vector<32x128xbf16>, vector<8x128xf32> -> vector<8x128xf32>
    %c0_3 = arith.constant 0 : index
    %c0_4 = arith.constant 0 : index
    %4 = vector.load %arg3[%c0_3, %c0_4] : memref<1x128xf32, #tpu.memory_space<vmem>>, vector<1x128xf32>
    %5 = vector.broadcast %4 : vector<1x128xf32> to vector<8x128xf32>
    %6 = arith.addf %3, %5 : vector<8x128xf32>
    %7 = arith.truncf %6 : vector<8x128xf32> to vector<8x128xbf16>
    %c0_5 = arith.constant 0 : index
    %c0_6 = arith.constant 0 : index
    %8 = vector.load %arg4[%c0_5, %c0_6] : memref<128x128xbf16, #tpu.memory_space<vmem>>, vector<128x128xbf16>
    %cst_7 = arith.constant dense<0.000000e+00> : vector<8x128xf32>
    %9 = tpu.matmul %7, %8, %cst_7 {dimension_numbers = #tpu.dot_dimension_numbers<[1], [0], [0], [1], [0, 0, 1, 1], [], []>} : vector<8x128xbf16>, vector<128x128xbf16>, vector<8x128xf32> -> vector<8x128xf32>
    %c0_8 = arith.constant 0 : index
    %c0_9 = arith.constant 0 : index
    %10 = vector.load %arg5[%c0_8, %c0_9] : memref<1x128xf32, #tpu.memory_space<vmem>>, vector<1x128xf32>
    %11 = vector.broadcast %10 : vector<1x128xf32> to vector<8x128xf32>
    %12 = arith.addf %9, %11 : vector<8x128xf32>
    %13 = arith.truncf %12 : vector<8x128xf32> to vector<8x128xbf16>
    %c0_10 = arith.constant 0 : index
    %c0_11 = arith.constant 0 : index
    %14 = vector.load %arg6[%c0_10, %c0_11] : memref<128x128xbf16, #tpu.memory_space<vmem>>, vector<128x128xbf16>
    %cst_12 = arith.constant dense<0.000000e+00> : vector<8x128xf32>
    %15 = tpu.matmul %13, %14, %cst_12 {dimension_numbers = #tpu.dot_dimension_numbers<[1], [0], [0], [1], [0, 0, 1, 1], [], []>} : vector<8x128xbf16>, vector<128x128xbf16>, vector<8x128xf32> -> vector<8x128xf32>
    %c0_13 = arith.constant 0 : index
    %c0_14 = arith.constant 0 : index
    %16 = vector.load %arg7[%c0_13, %c0_14] : memref<1x128xf32, #tpu.memory_space<vmem>>, vector<1x128xf32>
    %17 = vector.broadcast %16 : vector<1x128xf32> to vector<8x128xf32>
    %18 = arith.addf %15, %17 : vector<8x128xf32>
    %c0_15 = arith.constant 0 : index
    %c0_16 = arith.constant 0 : index
    %19 = vector.load %arg8[%c0_15, %c0_16] : memref<8x128xf32, #tpu.memory_space<vmem>>, vector<8x128xf32>
    tpu.vector_store %arg8[%c0_15, %c0_16], %18 {strides = array<i32>} : memref<8x128xf32, #tpu.memory_space<vmem>>, vector<8x128xf32>,
    return
  }
  func.func @transform_0(%arg0: i32) -> (i32, i32) {
    %c0_i32 = arith.constant 0 : i32
    %c0_i32_0 = arith.constant 0 : i32
    return %arg0, %c0_i32 : i32, i32
  }
  func.func @transform_1(%arg0: i32) -> (i32, i32) {
    %c0_i32 = arith.constant 0 : i32
    %c0_i32_0 = arith.constant 0 : i32
    %c0_i32_1 = arith.constant 0 : i32
    return %c0_i32, %c0_i32_0 : i32, i32
  }
  func.func @transform_2(%arg0: i32) -> (i32, i32) {
    %c0_i32 = arith.constant 0 : i32
    %c0_i32_0 = arith.constant 0 : i32
    %c0_i32_1 = arith.constant 0 : i32
    return %c0_i32, %c0_i32_0 : i32, i32
  }
  func.func @transform_3(%arg0: i32) -> (i32, i32) {
    %c0_i32 = arith.constant 0 : i32
    %c0_i32_0 = arith.constant 0 : i32
    %c0_i32_1 = arith.constant 0 : i32
    return %c0_i32, %c0_i32_0 : i32, i32
  }
  func.func @transform_4(%arg0: i32) -> (i32, i32) {
    %c0_i32 = arith.constant 0 : i32
    %c0_i32_0 = arith.constant 0 : i32
    %c0_i32_1 = arith.constant 0 : i32
    return %c0_i32, %c0_i32_0 : i32, i32
  }
  func.func @transform_5(%arg0: i32) -> (i32, i32) {
    %c0_i32 = arith.constant 0 : i32
    %c0_i32_0 = arith.constant 0 : i32
    %c0_i32_1 = arith.constant 0 : i32
    return %c0_i32, %c0_i32_0 : i32, i32
  }
  func.func @transform_6(%arg0: i32) -> (i32, i32) {
    %c0_i32 = arith.constant 0 : i32
    %c0_i32_0 = arith.constant 0 : i32
    %c0_i32_1 = arith.constant 0 : i32
    return %c0_i32, %c0_i32_0 : i32, i32
  }
  func.func @transform_7(%arg0: i32) -> (i32, i32) {
    %c0_i32 = arith.constant 0 : i32
    %c0_i32_0 = arith.constant 0 : i32
    return %arg0, %c0_i32 : i32, i32
  }
}

</mosaic_0001>

<llo_original>
// kernel: mlp_forward.1
$region0: #{mlp_forward.1}
  #allocation0 [shape = 'u32[]', space=smem, size = 0x4, offset = 0x4, fixed_abs, tag = 'smem constant byte address 0x4 - core index']
  #allocation1 [shape = 'u32[144,128]{1,0:T(1,128)}', space=vmem, size = 0x12000, scoped, tag = 'internal scratch']
  %s0 = inlined_call_operand.hbm [shape: f32[8,32], index: 0, kind: input, shape index: {}]
  %s1 = inlined_call_operand.hbm [shape: bf16[32,128], index: 1, kind: input, shape index: {}]
  %s2 = inlined_call_operand.vmem [shape: f32[1,128], index: 2, kind: input, shape index: {}]
  %s3 = inlined_call_operand.hbm [shape: bf16[128,128], index: 3, kind: input, shape index: {}]
  %s4 = inlined_call_operand.vmem [shape: f32[1,128], index: 4, kind: input, shape index: {}]
  %s5 = inlined_call_operand.hbm [shape: bf16[128,128], index: 5, kind: input, shape index: {}]
  %s6 = inlined_call_operand.vmem [shape: f32[1,128], index: 6, kind: input, shape index: {}]
  %s7 = inlined_call_operand.hbm [shape: f32[8,128], index: 7, kind: output, shape index: {}]
  %s8 = sld [smem:[#allocation0]]
  $region54: #{mlp_forward.1} parent=0
    _
  %s10 = ssub.s32 1, %s8
  %s11 = scalar_select 0, %s10, %s8
  $region1: #{mlp_forward.1} parent=0
    #allocation2 [shape = 'u8[4096]{0}', space=vmem, size = 0x1000, scoped, tag = 'input window, operand 0, single buffered']
    #allocation3 [shape = 's32[1]{0}', space=sflag, size = 0x4, scoped, tag = 'scoped memory for mlp_forward.1']
    #allocation4 [shape = 's32[1]{0}', space=sflag, size = 0x4, scoped, tag = 'scoped memory for mlp_forward.1']
    #allocation5 [shape = 'u8[8192]{0}', space=vmem, size = 0x2000, scoped, tag = 'input window, operand 1, single buffered']
    #allocation6 [shape = 's32[1]{0}', space=sflag, size = 0x4, scoped, tag = 'scoped memory for mlp_forward.1']
    #allocation7 [shape = 'u8[32768]{0}', space=vmem, size = 0x8000, scoped, tag = 'input window, operand 3, single buffered']
    #allocation8 [shape = 'u8[32768]{0}', space=vmem, size = 0x8000, scoped, tag = 'input window, operand 5, single buffered']
    #allocation9 [shape = 's32[1]{0}', space=sflag, size = 0x4, scoped, tag = 'scoped memory for mlp_forward.1']
    #allocation10 [shape = 'u8[4096]{0}', space=vmem, size = 0x1000, scoped, tag = 'output window, operand 0, single buffered']
    %12 = vsyncpa [#allocation3], 0
    %13 = vsyncpa [#allocation6], 0
    %14 = vsyncpa [#allocation9], 0
    %15 = vsyncpa [#allocation4], 0
    // Predicated region
    $region2: #{mlp_forward.1} parent=1 // pred_check
      _
    $region3: #{mlp_forward.1} parent=1 // pred_check_branch
      %17 = sbr.rel (0) target = $region5
    $region4: #{mlp_forward.1} parent=1 // pred_region
      %s19 = ssub.s32 128, 128
      %20 = vsyncadd [#allocation3], %s19
      %s22 = sshll.u32 [#allocation2], 4
      %s23 = int_to_ptr.vmem [resolvable:$true] %s22
      %25 = dma.hbm_to_vmem [thread:$0]  %s0, 128, %s23, [#allocation3]
    $region5: #{mlp_forward.1} parent=1 // pred_fallthru
      _
    // Predicated region
    $region6: #{mlp_forward.1} parent=1 // pred_check
      _
    $region7: #{mlp_forward.1} parent=1 // pred_check_branch
      %27 = sbr.rel (0) target = $region9
    $region8: #{mlp_forward.1} parent=1 // pred_region
      %s29 = ssub.s32 256, 256
      %30 = vsyncadd [#allocation6], %s29
      %s31 = sshll.u32 [#allocation5], 4
      %s32 = int_to_ptr.vmem [resolvable:$true] %s31
      %37 = dma.hbm_to_vmem [thread:$0]  %s1, 256, %s32, [#allocation6], 64, 64, 4
    $region9: #{mlp_forward.1} parent=1 // pred_fallthru
      _
    // Predicated region
    $region10: #{mlp_forward.1} parent=1 // pred_check
      _
    $region11: #{mlp_forward.1} parent=1 // pred_check_branch
      %39 = sbr.rel (0) target = $region13
    $region12: #{mlp_forward.1} parent=1 // pred_region
      _
    $region13: #{mlp_forward.1} parent=1 // pred_fallthru
      _
    // Predicated region
    $region14: #{mlp_forward.1} parent=1 // pred_check
      _
    $region15: #{mlp_forward.1} parent=1 // pred_check_branch
      %41 = sbr.rel (0) target = $region17
    $region16: #{mlp_forward.1} parent=1 // pred_region
      %s43 = ssub.s32 1024, 1024
      %44 = vsyncadd [#allocation6], %s43
      %s45 = sshll.u32 [#allocation7], 4
      %s46 = int_to_ptr.vmem [resolvable:$true] %s45
      %51 = dma.hbm_to_vmem [thread:$0]  %s3, 1024, %s46, [#allocation6], 64, 64, 4
    $region17: #{mlp_forward.1} parent=1 // pred_fallthru
      _
    // Predicated region
    $region18: #{mlp_forward.1} parent=1 // pred_check
      _
    $region19: #{mlp_forward.1} parent=1 // pred_check_branch
      %53 = sbr.rel (0) target = $region21
    $region20: #{mlp_forward.1} parent=1 // pred_region
      _
    $region21: #{mlp_forward.1} parent=1 // pred_fallthru
      _
    // Predicated region
    $region22: #{mlp_forward.1} parent=1 // pred_check
      _
    $region23: #{mlp_forward.1} parent=1 // pred_check_branch
      %55 = sbr.rel (0) target = $region25
    $region24: #{mlp_forward.1} parent=1 // pred_region
      %s57 = ssub.s32 1024, 1024
      %58 = vsyncadd [#allocation9], %s57
      %s59 = sshll.u32 [#allocation8], 4
      %s60 = int_to_ptr.vmem [resolvable:$true] %s59
      %65 = dma.hbm_to_vmem [thread:$0]  %s5, 1024, %s60, [#allocation9], 64, 64, 4
    $region25: #{mlp_forward.1} parent=1 // pred_fallthru
      _
    // Predicated region
    $region26: #{mlp_forward.1} parent=1 // pred_check
      _
    $region27: #{mlp_forward.1} parent=1 // pred_check_branch
      %67 = sbr.rel (0) target = $region29
    $region28: #{mlp_forward.1} parent=1 // pred_region
      _
    $region29: #{mlp_forward.1} parent=1 // pred_fallthru
      _
    // Predicated region
    $region30: #{mlp_forward.1} parent=1 // pred_check
      _
    $region31: #{mlp_forward.1} parent=1 // pred_check_branch
      %69 = sbr.rel (0) target = $region33
    $region32: #{mlp_forward.1} parent=1 // pred_region
      %70 = dma.done [#allocation3], 128
    $region33: #{mlp_forward.1} parent=1 // pred_fallthru
      _
    // Predicated region
    $region34: #{mlp_forward.1} parent=1 // pred_check
      _
    $region35: #{mlp_forward.1} parent=1 // pred_check_branch
      %72 = sbr.rel (0) target = $region37
    $region36: #{mlp_forward.1} parent=1 // pred_region
      %73 = dma.done [#allocation6], 256
    $region37: #{mlp_forward.1} parent=1 // pred_fallthru
      _
    // Predicated region
    $region38: #{mlp_forward.1} parent=1 // pred_check
      _
    $region39: #{mlp_forward.1} parent=1 // pred_check_branch
      %75 = sbr.rel (0) target = $region41
    $region40: #{mlp_forward.1} parent=1 // pred_region
      %76 = dma.done [#allocation6], 1024
    $region41: #{mlp_forward.1} parent=1 // pred_fallthru
      _
    // Predicated region
    $region42: #{mlp_forward.1} parent=1 // pred_check
      _
    $region43: #{mlp_forward.1} parent=1 // pred_check_branch
      %78 = sbr.rel (0) target = $region45
    $region44: #{mlp_forward.1} parent=1 // pred_region
      %79 = dma.done [#allocation9], 1024
    $region45: #{mlp_forward.1} parent=1 // pred_fallthru
      _
    %v81 = vld [vmem:[#allocation2] sm:$0xff]
    %v82 = vpack.c.bf16 %v81, %v81
    %v83 = vld [vmem:[#allocation5] sm:$0xf]
    %v84 = vld [vmem:[#allocation5 + $0x4] sm:$0xf]
    %v85 = vld [vmem:[#allocation5 + $0x8] sm:$0xf]
    %v86 = vld [vmem:[#allocation5 + $0xc] sm:$0xf]
    %v87 = vld [vmem:[%s2] sm:$0x1]
    %v89 = vlaneseq
    %v90 = vshrl.u32 %v89, 7
    %v91 = vsub.s32 0, %v90
    %v92 = vrot.slane %v87, %v91
    %v98 = vunpack.c.l.b16 %v83
    %v99 = vunpack.c.l.b16 %v84
    %v100 = vunpack.c.l.b16 %v85
    %v101 = vunpack.c.l.b16 %v86
    %v102 = vpack.c.b16 %v99, %v98
    %v103 = vpack.c.b16 %v101, %v100
    %vm106 = vcmask 261120
    %v108 = vsel %vm106, %v82, 0
    %110 = vmatprep.subr.bf16.mxu0 0
    %111 = vmatpush1.bf16.msra.mxu0 %v102
    %112 = vmatprep.subr.bf16.mxu0 0
    %113 = vmatpush1.bf16.msra.mxu0 %v103
    %114 = vmatprep.subr.bf16.mxu0 0
    %115 = vmatpush1.bf16.msra.mxu0 0
    %116 = vmatprep.subr.bf16.mxu0 0
    %117 = vmatpush1.bf16.msra.mxu0 0
    %118 = vmatprep.subr.bf16.mxu0 0
    %119 = vmatpush1.bf16.msra.mxu0 0
    %120 = vmatprep.subr.bf16.mxu0 0
    %121 = vmatpush1.bf16.msra.mxu0 0
    %122 = vmatprep.subr.bf16.mxu0 0
    %123 = vmatpush1.bf16.msra.mxu0 0
    %124 = vmatprep.subr.bf16.mxu0 0
    %125 = vmatpush1.bf16.msra.mxu0 0
    %126 = vmatprep.subr.bf16.mxu0 0
    %127 = vmatpush1.bf16.msra.mxu0 0
    %128 = vmatprep.subr.bf16.mxu0 0
    %129 = vmatpush1.bf16.msra.mxu0 0
    %130 = vmatprep.subr.bf16.mxu0 0
    %131 = vmatpush1.bf16.msra.mxu0 0
    %132 = vmatprep.subr.bf16.mxu0 0
    %133 = vmatpush1.bf16.msra.mxu0 0
    %134 = vmatprep.subr.bf16.mxu0 0
    %135 = vmatpush1.bf16.msra.mxu0 0
    %136 = vmatprep.subr.bf16.mxu0 0
    %137 = vmatpush1.bf16.msra.mxu0 0
    %138 = vmatprep.subr.bf16.mxu0 0
    %139 = vmatpush1.bf16.msra.mxu0 0
    %140 = vmatprep.subr.bf16.mxu0 0
    %141 = vmatpush1.bf16.msra.mxu0 0
    %142 = vmatprep.mubr.bf16.mxu0 0
    %143 = vmatmul.mubr.bf16.gmra.mrb[0].mxu0 %v108
    %v144 = vpop.f32.mrb[0].mxu0
    %v145 = vadd.f32 %v92, %v144
    %v146 = vpop.f32.mrb[0].mxu0
    %v147 = vpop.f32.mrb[0].mxu0
    %v148 = vpop.f32.mrb[0].mxu0
    %149 = vdwg.mxu0
    %v150 = vpack.c.bf16 %v145, %v145
    %v151 = vld [vmem:[#allocation7] sm:$0xf]
    %v152 = vld [vmem:[#allocation7 + $0x4] sm:$0xf]
    %v153 = vld [vmem:[#allocation7 + $0x8] sm:$0xf]
    %v154 = vld [vmem:[#allocation7 + $0xc] sm:$0xf]
    %v155 = vld [vmem:[#allocation7 + $0x10] sm:$0xf]
    %v156 = vld [vmem:[#allocation7 + $0x14] sm:$0xf]
    %v157 = vld [vmem:[#allocation7 + $0x18] sm:$0xf]
    %v158 = vld [vmem:[#allocation7 + $0x1c] sm:$0xf]
    %v159 = vld [vmem:[#allocation7 + $0x20] sm:$0xf]
    %v160 = vld [vmem:[#allocation7 + $0x24] sm:$0xf]
    %v161 = vld [vmem:[#allocation7 + $0x28] sm:$0xf]
    %v162 = vld [vmem:[#allocation7 + $0x2c] sm:$0xf]
    %v163 = vld [vmem:[#allocation7 + $0x30] sm:$0xf]
    %v164 = vld [vmem:[#allocation7 + $0x34] sm:$0xf]
    %v165 = vld [vmem:[#allocation7 + $0x38] sm:$0xf]
    %v166 = vld [vmem:[#allocation7 + $0x3c] sm:$0xf]
    %v167 = vld [vmem:[%s4] sm:$0x1]
    %v169 = vlaneseq
    %v170 = vshrl.u32 %v169, 7
    %v171 = vsub.s32 0, %v170
    %v172 = vrot.slane %v167, %v171
    %v190 = vunpack.c.l.b16 %v151
    %v191 = vunpack.c.l.b16 %v152
    %v192 = vunpack.c.l.b16 %v153
    %v193 = vunpack.c.l.b16 %v154
    %v194 = vunpack.c.l.b16 %v155
    %v195 = vunpack.c.l.b16 %v156
    %v196 = vunpack.c.l.b16 %v157
    %v197 = vunpack.c.l.b16 %v158
    %v198 = vunpack.c.l.b16 %v159
    %v199 = vunpack.c.l.b16 %v160
    %v200 = vunpack.c.l.b16 %v161
    %v201 = vunpack.c.l.b16 %v162
    %v202 = vunpack.c.l.b16 %v163
    %v203 = vunpack.c.l.b16 %v164
    %v204 = vunpack.c.l.b16 %v165
    %v205 = vunpack.c.l.b16 %v166
    %v206 = vpack.c.b16 %v191, %v190
    %v207 = vpack.c.b16 %v193, %v192
    %v208 = vpack.c.b16 %v195, %v194
    %v209 = vpack.c.b16 %v197, %v196
    %v210 = vpack.c.b16 %v199, %v198
    %v211 = vpack.c.b16 %v201, %v200
    %v212 = vpack.c.b16 %v203, %v202
    %v213 = vpack.c.b16 %v205, %v204
    %222 = vmatprep.subr.bf16.mxu0 0
    %223 = vmatpush1.bf16.msra.mxu0 %v206
    %224 = vmatprep.subr.bf16.mxu0 0
    %225 = vmatpush1.bf16.msra.mxu0 %v207
    %226 = vmatprep.subr.bf16.mxu0 0
    %227 = vmatpush1.bf16.msra.mxu0 %v208
    %228 = vmatprep.subr.bf16.mxu0 0
    %229 = vmatpush1.bf16.msra.mxu0 %v209
    %230 = vmatprep.subr.bf16.mxu0 0
    %231 = vmatpush1.bf16.msra.mxu0 %v210
    %232 = vmatprep.subr.bf16.mxu0 0
    %233 = vmatpush1.bf16.msra.mxu0 %v211
    %234 = vmatprep.subr.bf16.mxu0 0
    %235 = vmatpush1.bf16.msra.mxu0 %v212
    %236 = vmatprep.subr.bf16.mxu0 0
    %237 = vmatpush1.bf16.msra.mxu0 %v213
    %238 = vmatprep.subr.bf16.mxu0 0
    %239 = vmatpush1.bf16.msra.mxu0 0
    %240 = vmatprep.subr.bf16.mxu0 0
    %241 = vmatpush1.bf16.msra.mxu0 0
    %242 = vmatprep.subr.bf16.mxu0 0
    %243 = vmatpush1.bf16.msra.mxu0 0
    %244 = vmatprep.subr.bf16.mxu0 0
    %245 = vmatpush1.bf16.msra.mxu0 0
    %246 = vmatprep.subr.bf16.mxu0 0
    %247 = vmatpush1.bf16.msra.mxu0 0
    %248 = vmatprep.subr.bf16.mxu0 0
    %249 = vmatpush1.bf16.msra.mxu0 0
    %250 = vmatprep.subr.bf16.mxu0 0
    %251 = vmatpush1.bf16.msra.mxu0 0
    %252 = vmatprep.subr.bf16.mxu0 0
    %253 = vmatpush1.bf16.msra.mxu0 0
    %254 = vmatprep.mubr.bf16.mxu0 0
    %255 = vmatmul.mubr.bf16.gmra.mrb[0].mxu0 %v150
    %v256 = vpop.f32.mrb[0].mxu0
    %v257 = vadd.f32 %v172, %v256
    %v258 = vpop.f32.mrb[0].mxu0
    %v259 = vpop.f32.mrb[0].mxu0
    %v260 = vpop.f32.mrb[0].mxu0
    %261 = vdwg.mxu0
    %v262 = vpack.c.bf16 %v257, %v257
    %v263 = vld [vmem:[#allocation8] sm:$0xf]
    %v264 = vld [vmem:[#allocation8 + $0x4] sm:$0xf]
    %v265 = vld [vmem:[#allocation8 + $0x8] sm:$0xf]
    %v266 = vld [vmem:[#allocation8 + $0xc] sm:$0xf]
    %v267 = vld [vmem:[#allocation8 + $0x10] sm:$0xf]
    %v268 = vld [vmem:[#allocation8 + $0x14] sm:$0xf]
    %v269 = vld [vmem:[#allocation8 + $0x18] sm:$0xf]
    %v270 = vld [vmem:[#allocation8 + $0x1c] sm:$0xf]
    %v271 = vld [vmem:[#allocation8 + $0x20] sm:$0xf]
    %v272 = vld [vmem:[#allocation8 + $0x24] sm:$0xf]
    %v273 = vld [vmem:[#allocation8 + $0x28] sm:$0xf]
    %v274 = vld [vmem:[#allocation8 + $0x2c] sm:$0xf]
    %v275 = vld [vmem:[#allocation8 + $0x30] sm:$0xf]
    %v276 = vld [vmem:[#allocation8 + $0x34] sm:$0xf]
    %v277 = vld [vmem:[#allocation8 + $0x38] sm:$0xf]
    %v278 = vld [vmem:[#allocation8 + $0x3c] sm:$0xf]
    %v279 = vld [vmem:[%s6] sm:$0x1]
    %v281 = vlaneseq
    %v282 = vshrl.u32 %v281, 7
    %v283 = vsub.s32 0, %v282
    %v284 = vrot.slane %v279, %v283
    %v302 = vunpack.c.l.b16 %v263
    %v303 = vunpack.c.l.b16 %v264
    %v304 = vunpack.c.l.b16 %v265
    %v305 = vunpack.c.l.b16 %v266
    %v306 = vunpack.c.l.b16 %v267
    %v307 = vunpack.c.l.b16 %v268
    %v308 = vunpack.c.l.b16 %v269
    %v309 = vunpack.c.l.b16 %v270
    %v310 = vunpack.c.l.b16 %v271
    %v311 = vunpack.c.l.b16 %v272
    %v312 = vunpack.c.l.b16 %v273
    %v313 = vunpack.c.l.b16 %v274
    %v314 = vunpack.c.l.b16 %v275
    %v315 = vunpack.c.l.b16 %v276
    %v316 = vunpack.c.l.b16 %v277
    %v317 = vunpack.c.l.b16 %v278
    %v318 = vpack.c.b16 %v303, %v302
    %v319 = vpack.c.b16 %v305, %v304
    %v320 = vpack.c.b16 %v307, %v306
    %v321 = vpack.c.b16 %v309, %v308
    %v322 = vpack.c.b16 %v311, %v310
    %v323 = vpack.c.b16 %v313, %v312
    %v324 = vpack.c.b16 %v315, %v314
    %v325 = vpack.c.b16 %v317, %v316
    %334 = vmatprep.subr.bf16.mxu0 0
    %335 = vmatpush1.bf16.msra.mxu0 %v318
    %336 = vmatprep.subr.bf16.mxu0 0
    %337 = vmatpush1.bf16.msra.mxu0 %v319
    %338 = vmatprep.subr.bf16.mxu0 0
    %339 = vmatpush1.bf16.msra.mxu0 %v320
    %340 = vmatprep.subr.bf16.mxu0 0
    %341 = vmatpush1.bf16.msra.mxu0 %v321
    %342 = vmatprep.subr.bf16.mxu0 0
    %343 = vmatpush1.bf16.msra.mxu0 %v322
    %344 = vmatprep.subr.bf16.mxu0 0
    %345 = vmatpush1.bf16.msra.mxu0 %v323
    %346 = vmatprep.subr.bf16.mxu0 0
    %347 = vmatpush1.bf16.msra.mxu0 %v324
    %348 = vmatprep.subr.bf16.mxu0 0
    %349 = vmatpush1.bf16.msra.mxu0 %v325
    %350 = vmatprep.subr.bf16.mxu0 0
    %351 = vmatpush1.bf16.msra.mxu0 0
    %352 = vmatprep.subr.bf16.mxu0 0
    %353 = vmatpush1.bf16.msra.mxu0 0
    %354 = vmatprep.subr.bf16.mxu0 0
    %355 = vmatpush1.bf16.msra.mxu0 0
    %356 = vmatprep.subr.bf16.mxu0 0
    %357 = vmatpush1.bf16.msra.mxu0 0
    %358 = vmatprep.subr.bf16.mxu0 0
    %359 = vmatpush1.bf16.msra.mxu0 0
    %360 = vmatprep.subr.bf16.mxu0 0
    %361 = vmatpush1.bf16.msra.mxu0 0
    %362 = vmatprep.subr.bf16.mxu0 0
    %363 = vmatpush1.bf16.msra.mxu0 0
    %364 = vmatprep.subr.bf16.mxu0 0
    %365 = vmatpush1.bf16.msra.mxu0 0
    %366 = vmatprep.mubr.bf16.mxu0 0
    %367 = vmatmul.mubr.bf16.gmra.mrb[0].mxu0 %v262
    %v368 = vpop.f32.mrb[0].mxu0
    %v369 = vadd.f32 %v284, %v368
    %v370 = vpop.f32.mrb[0].mxu0
    %v371 = vpop.f32.mrb[0].mxu0
    %v372 = vpop.f32.mrb[0].mxu0
    %373 = vdwg.mxu0
    %374 = vst [vmem:[#allocation10] sm:$0xff] %v369
    // Predicated region
    $region46: #{mlp_forward.1} parent=1 // pred_check
      _
    $region47: #{mlp_forward.1} parent=1 // pred_check_branch
      %376 = sbr.rel (0) target = $region49
    $region48: #{mlp_forward.1} parent=1 // pred_region
      %s378 = ssub.s32 128, 128
      %379 = vsyncadd [#allocation4], %s378
      %s381 = sshll.u32 [#allocation10], 4
      %s382 = int_to_ptr.vmem [resolvable:$true] %s381
      %384 = dma.vmem_to_hbm [thread:$0]  %s382, 128, %s7, [#allocation4]
    $region49: #{mlp_forward.1} parent=1 // pred_fallthru
      _
    // Predicated region
    $region50: #{mlp_forward.1} parent=1 // pred_check
      _
    $region51: #{mlp_forward.1} parent=1 // pred_check_branch
      %386 = sbr.rel (0) target = $region53
    $region52: #{mlp_forward.1} parent=1 // pred_region
      %387 = dma.done [#allocation4], 128
    $region53: #{mlp_forward.1} parent=1 // pred_fallthru
      _
    %388 = vsyncpa [#allocation3], 1
    %389 = vsyncpa [#allocation6], 1
    %390 = vsyncpa [#allocation9], 1
    %391 = vsyncpa [#allocation4], 1

</llo_original>
